<compile_context>
chip_gen: v7x
topology: tpu7x:2x2x1
jax: 0.10.0
libtpu: 0.0.40
codegen_flags: <defaults>
</compile_context>

<pallas_src>
import jax
import jax.numpy as jnp
from jax.experimental import pallas as pl
from jax.experimental.pallas import tpu as pltpu

# MLP layer sizes from the PyTorch module
DIMS = [784, 128, 64, 32, 16, 10]
IN_DIM = DIMS[0]          # 784 -- streamed at natural width (full last dim)
HID = 128                 # lane-dense padded hidden / output width


def _cdiv(a, m):
    return (a + m - 1) // m


def _round_up(a, m):
    return _cdiv(a, m) * m


def mlp_kernel(x_ref,
               w1_ref, b1_ref,
               w2_ref, b2_ref,
               w3_ref, b3_ref,
               w4_ref, b4_ref,
               w5_ref, b5_ref,
               o_ref):
    """Fused forward for one batch tile: (Linear + ReLU) x 4 + final Linear.

    x_ref : (TILE_B, 784) f32   -- cast to bf16 in-kernel
    wN_ref: (K, 128) bf16       -- K = 784 for layer 1 else 128; zero-padded
    bN_ref: (1, 128) f32        -- zero-padded
    o_ref : (TILE_B, 128) bf16  -- real logits live in cols 0..9
    """
    h = x_ref[...].astype(jnp.bfloat16)

    def dense(h, w_ref, b_ref):
        # bf16 x bf16 operands, f32 accumulation on the MXU, f32 bias add.
        return jnp.dot(h, w_ref[...], preferred_element_type=jnp.float32) + b_ref[...]

    h = jnp.maximum(dense(h, w1_ref, b1_ref), 0.0).astype(jnp.bfloat16)
    h = jnp.maximum(dense(h, w2_ref, b2_ref), 0.0).astype(jnp.bfloat16)
    h = jnp.maximum(dense(h, w3_ref, b3_ref), 0.0).astype(jnp.bfloat16)
    h = jnp.maximum(dense(h, w4_ref, b4_ref), 0.0).astype(jnp.bfloat16)
    o_ref[...] = dense(h, w5_ref, b5_ref).astype(o_ref.dtype)


def _choose_tile_b(n, target=2048, min_split=512):
    """Tile so batch-padding waste is <= 8 rows/tile; split mid-size batches
    into >= 2 tiles so the parallel axis can span both TensorCores on v7x."""
    n8 = _round_up(max(n, 8), 8)
    n_tiles = max(_cdiv(n8, target), 1)
    if n_tiles == 1 and n8 >= min_split:
        n_tiles = 2
    return _round_up(_cdiv(n8, n_tiles), 8)


def nonlinear_forward(x_nchw, params, tile_b=None):
    """x_nchw: (N, 1, 28, 28) float32. params: list of (W^T (in,out), b (out,))."""
    n = x_nchw.shape[0]
    x = x_nchw.reshape(n, -1)                     # nn.Flatten(): (N, 784) f32
    assert x.shape[1] == IN_DIM, f"expected {IN_DIM} features, got {x.shape[1]}"

    if tile_b is None:
        tile_b = _choose_tile_b(n)
    tile_b = max(8, _round_up(tile_b, 8))
    n_pad = _round_up(max(n, tile_b), tile_b)
    n_tiles = n_pad // tile_b

    # Only the batch axis is padded (zeros, sliced off later); the feature dim
    # is streamed at its natural 784 width and cast to bf16 inside the kernel.
    if n_pad != n:
        x = jnp.pad(x, ((0, n_pad - n), (0, 0)))

    flat_inputs = [x]
    in_specs = [pl.BlockSpec((tile_b, IN_DIM), lambda i: (i, 0))]
    for li, (wt, b) in enumerate(params):
        k_in, k_out = wt.shape
        k_in_p = IN_DIM if li == 0 else HID       # layer 1 keeps 784 rows
        wt_p = jnp.pad(wt, ((0, k_in_p - k_in), (0, HID - k_out))).astype(jnp.bfloat16)
        b_p = jnp.pad(b, (0, HID - k_out)).reshape(1, -1).astype(jnp.float32)
        flat_inputs += [wt_p, b_p]
        # Full-array blocks with constant index_map -> weights stay VMEM-resident.
        in_specs += [pl.BlockSpec(wt_p.shape, lambda i: (0, 0)),
                     pl.BlockSpec(b_p.shape, lambda i: (0, 0))]

    flops = 2 * n_pad * (IN_DIM * HID + 4 * HID * HID)
    bytes_accessed = (n_pad * IN_DIM * 4                    # f32 x read
                      + n_pad * HID * 2                     # bf16 output write
                      + sum(int(a.size) * a.dtype.itemsize for a in flat_inputs[1:]))

    out = pl.pallas_call(
        mlp_kernel,
        out_shape=jax.ShapeDtypeStruct((n_pad, HID), jnp.bfloat16),
        grid_spec=pltpu.PrefetchScalarGridSpec(
            num_scalar_prefetch=0,
            grid=(n_tiles,),
            in_specs=in_specs,
            out_specs=pl.BlockSpec((tile_b, HID), lambda i: (i, 0)),
        ),
        compiler_params=pltpu.CompilerParams(
            dimension_semantics=("parallel",),
            vmem_limit_bytes=48 * 1024 * 1024,   # above v5e's 16 MiB default, under v7x physical
        ),
        cost_estimate=pl.CostEstimate(flops=flops, transcendentals=0,
                                      bytes_accessed=bytes_accessed),
    )(*flat_inputs)

    # Drop batch padding / lane padding; return f32 logits like the module.
    return out[:n, :DIMS[-1]].astype(jnp.float32)


def init_params(key):
    """Deterministic init matching PyTorch Linear shapes (kaiming-uniform-like)."""
    params = []
    for i in range(len(DIMS) - 1):
        fan_in, fan_out = DIMS[i], DIMS[i + 1]
        key, kw, kb = jax.random.split(key, 3)
        bound = 1.0 / jnp.sqrt(fan_in)
        # PyTorch stores W as (out, in); we keep the transpose (in, out).
        wt = jax.random.uniform(kw, (fan_in, fan_out), jnp.float32, -bound, bound)
        b = jax.random.uniform(kb, (fan_out,), jnp.float32, -bound, bound)
        params.append((wt, b))
    return params


def reference_forward(x_nchw, params):
    """Pure-JAX reference with the same quantization points as the kernel:
    bf16 matmul operands, f32 accumulation + bias, bf16 inter-layer
    activations, bf16 logits (then cast to f32)."""
    h = x_nchw.reshape(x_nchw.shape[0], -1).astype(jnp.bfloat16)
    z = None
    for i, (wt, b) in enumerate(params):
        z = jnp.dot(h.astype(jnp.float32),
                    wt.astype(jnp.bfloat16).astype(jnp.float32),
                    precision=jax.lax.Precision.HIGHEST) + b
        if i < len(params) - 1:
            h = jnp.maximum(z, 0.0).astype(jnp.bfloat16)
    return z.astype(jnp.bfloat16).astype(jnp.float32)


if __name__ == "__main__":
    key = jax.random.PRNGKey(0)
    key, kx1, kx2, kx3 = jax.random.split(key, 4)
    params = init_params(key)

    # Small demo batch: (N, 1, 28, 28) -> Flatten -> 784 features.
    x = jax.random.normal(kx1, (2, 1, 28, 28), jnp.float32)
    y = jax.block_until_ready(nonlinear_forward(x, params))
    y_ref = reference_forward(x, params)
    assert y.shape == (2, 10), y.shape
    assert jnp.allclose(y, y_ref, atol=2e-2, rtol=2e-2), "mismatch vs reference (batch=2)"

    # Multi-tile grid / index_map path: batch=24 with a forced 8-row tile (3 steps).
    x2 = jax.random.normal(kx2, (24, 1, 28, 28), jnp.float32)
    y2 = jax.block_until_ready(nonlinear_forward(x2, params, tile_b=8))
    y2_ref = reference_forward(x2, params)
    assert y2.shape == (24, 10), y2.shape
    assert jnp.allclose(y2, y2_ref, atol=2e-2, rtol=2e-2), "mismatch vs reference (batch=24)"

    # Auto tile selection on a ragged batch: splits into 2 parallel tiles
    # (megacore path on v7x) with <= 8 rows of padding per tile.
    x3 = jax.random.normal(kx3, (600, 1, 28, 28), jnp.float32)
    y3 = jax.block_until_ready(nonlinear_forward(x3, params))
    y3_ref = reference_forward(x3, params)
    assert y3.shape == (600, 10), y3.shape
    assert jnp.allclose(y3, y3_ref, atol=2e-2, rtol=2e-2), "mismatch vs reference (batch=600)"

    print("KERNEL_OK")
</pallas_src>

<mosaic_0001>
module attributes {stable_mosaic.version = 11 : i64} {
  func.func @mlp_kernel(%arg0: i32, %arg1: memref<8x784xf32, #tpu.memory_space<vmem>>, %arg2: memref<784x128xbf16, #tpu.memory_space<vmem>>, %arg3: memref<1x128xf32, #tpu.memory_space<vmem>>, %arg4: memref<128x128xbf16, #tpu.memory_space<vmem>>, %arg5: memref<1x128xf32, #tpu.memory_space<vmem>>, %arg6: memref<128x128xbf16, #tpu.memory_space<vmem>>, %arg7: memref<1x128xf32, #tpu.memory_space<vmem>>, %arg8: memref<128x128xbf16, #tpu.memory_space<vmem>>, %arg9: memref<1x128xf32, #tpu.memory_space<vmem>>, %arg10: memref<128x128xbf16, #tpu.memory_space<vmem>>, %arg11: memref<1x128xf32, #tpu.memory_space<vmem>>, %arg12: memref<8x128xbf16, #tpu.memory_space<vmem>>) attributes {dimension_semantics = [#tpu.dimension_semantics<parallel>], iteration_bounds = array<i64: 1>, scalar_prefetch = 0 : i64, scratch_operands = 0 : i64, tpu.core_type = #tpu.core_type<tc>, window_params = [{transform_indices = @transform_0, window_bounds = array<i64: 8, 784>}, {pipeline_mode = #tpu.pipeline_mode<synchronous>, transform_indices = @transform_1, window_bounds = array<i64: 784, 128>}, {pipeline_mode = #tpu.pipeline_mode<synchronous>, transform_indices = @transform_2, window_bounds = array<i64: 1, 128>}, {pipeline_mode = #tpu.pipeline_mode<synchronous>, transform_indices = @transform_3, window_bounds = array<i64: 128, 128>}, {pipeline_mode = #tpu.pipeline_mode<synchronous>, transform_indices = @transform_4, window_bounds = array<i64: 1, 128>}, {pipeline_mode = #tpu.pipeline_mode<synchronous>, transform_indices = @transform_5, window_bounds = array<i64: 128, 128>}, {pipeline_mode = #tpu.pipeline_mode<synchronous>, transform_indices = @transform_6, window_bounds = array<i64: 1, 128>}, {pipeline_mode = #tpu.pipeline_mode<synchronous>, transform_indices = @transform_7, window_bounds = array<i64: 128, 128>}, {pipeline_mode = #tpu.pipeline_mode<synchronous>, transform_indices = @transform_8, window_bounds = array<i64: 1, 128>}, {pipeline_mode = #tpu.pipeline_mode<synchronous>, transform_indices = @transform_9, window_bounds = array<i64: 128, 128>}, {pipeline_mode = #tpu.pipeline_mode<synchronous>, transform_indices = @transform_10, window_bounds = array<i64: 1, 128>}, {transform_indices = @transform_11, window_bounds = array<i64: 8, 128>}]} {
    %c0 = arith.constant 0 : index
    %c0_0 = arith.constant 0 : index
    %0 = vector.load %arg1[%c0, %c0_0] : memref<8x784xf32, #tpu.memory_space<vmem>>, vector<8x784xf32>
    %1 = arith.truncf %0 : vector<8x784xf32> to vector<8x784xbf16>
    %c0_1 = arith.constant 0 : index
    %c0_2 = arith.constant 0 : index
    %2 = vector.load %arg2[%c0_1, %c0_2] : memref<784x128xbf16, #tpu.memory_space<vmem>>, vector<784x128xbf16>
    %cst = arith.constant dense<0.000000e+00> : vector<8x128xf32>
    %3 = tpu.matmul %1, %2, %cst {dimension_numbers = #tpu.dot_dimension_numbers<[1], [0], [0], [1], [0, 0, 1, 1], [], []>} : vector<8x784xbf16>, vector<784x128xbf16>, vector<8x128xf32> -> vector<8x128xf32>
    %c0_3 = arith.constant 0 : index
    %c0_4 = arith.constant 0 : index
    %4 = vector.load %arg3[%c0_3, %c0_4] : memref<1x128xf32, #tpu.memory_space<vmem>>, vector<1x128xf32>
    %5 = vector.broadcast %4 : vector<1x128xf32> to vector<8x128xf32>
    %6 = arith.addf %3, %5 : vector<8x128xf32>
    %cst_5 = arith.constant 0.000000e+00 : f32
    %7 = vector.broadcast %cst_5 : f32 to vector<8x128xf32>
    %8 = arith.maximumf %6, %7 : vector<8x128xf32>
    %9 = arith.truncf %8 : vector<8x128xf32> to vector<8x128xbf16>
    %c0_6 = arith.constant 0 : index
    %c0_7 = arith.constant 0 : index
    %10 = vector.load %arg4[%c0_6, %c0_7] : memref<128x128xbf16, #tpu.memory_space<vmem>>, vector<128x128xbf16>
    %cst_8 = arith.constant dense<0.000000e+00> : vector<8x128xf32>
    %11 = tpu.matmul %9, %10, %cst_8 {dimension_numbers = #tpu.dot_dimension_numbers<[1], [0], [0], [1], [0, 0, 1, 1], [], []>} : vector<8x128xbf16>, vector<128x128xbf16>, vector<8x128xf32> -> vector<8x128xf32>
    %c0_9 = arith.constant 0 : index
    %c0_10 = arith.constant 0 : index
    %12 = vector.load %arg5[%c0_9, %c0_10] : memref<1x128xf32, #tpu.memory_space<vmem>>, vector<1x128xf32>
    %13 = vector.broadcast %12 : vector<1x128xf32> to vector<8x128xf32>
    %14 = arith.addf %11, %13 : vector<8x128xf32>
    %cst_11 = arith.constant 0.000000e+00 : f32
    %15 = vector.broadcast %cst_11 : f32 to vector<8x128xf32>
    %16 = arith.maximumf %14, %15 : vector<8x128xf32>
    %17 = arith.truncf %16 : vector<8x128xf32> to vector<8x128xbf16>
    %c0_12 = arith.constant 0 : index
    %c0_13 = arith.constant 0 : index
    %18 = vector.load %arg6[%c0_12, %c0_13] : memref<128x128xbf16, #tpu.memory_space<vmem>>, vector<128x128xbf16>
    %cst_14 = arith.constant dense<0.000000e+00> : vector<8x128xf32>
    %19 = tpu.matmul %17, %18, %cst_14 {dimension_numbers = #tpu.dot_dimension_numbers<[1], [0], [0], [1], [0, 0, 1, 1], [], []>} : vector<8x128xbf16>, vector<128x128xbf16>, vector<8x128xf32> -> vector<8x128xf32>
    %c0_15 = arith.constant 0 : index
    %c0_16 = arith.constant 0 : index
    %20 = vector.load %arg7[%c0_15, %c0_16] : memref<1x128xf32, #tpu.memory_space<vmem>>, vector<1x128xf32>
    %21 = vector.broadcast %20 : vector<1x128xf32> to vector<8x128xf32>
    %22 = arith.addf %19, %21 : vector<8x128xf32>
    %cst_17 = arith.constant 0.000000e+00 : f32
    %23 = vector.broadcast %cst_17 : f32 to vector<8x128xf32>
    %24 = arith.maximumf %22, %23 : vector<8x128xf32>
    %25 = arith.truncf %24 : vector<8x128xf32> to vector<8x128xbf16>
    %c0_18 = arith.constant 0 : index
    %c0_19 = arith.constant 0 : index
    %26 = vector.load %arg8[%c0_18, %c0_19] : memref<128x128xbf16, #tpu.memory_space<vmem>>, vector<128x128xbf16>
    %cst_20 = arith.constant dense<0.000000e+00> : vector<8x128xf32>
    %27 = tpu.matmul %25, %26, %cst_20 {dimension_numbers = #tpu.dot_dimension_numbers<[1], [0], [0], [1], [0, 0, 1, 1], [], []>} : vector<8x128xbf16>, vector<128x128xbf16>, vector<8x128xf32> -> vector<8x128xf32>
    %c0_21 = arith.constant 0 : index
    %c0_22 = arith.constant 0 : index
    %28 = vector.load %arg9[%c0_21, %c0_22] : memref<1x128xf32, #tpu.memory_space<vmem>>, vector<1x128xf32>
    %29 = vector.broadcast %28 : vector<1x128xf32> to vector<8x128xf32>
    %30 = arith.addf %27, %29 : vector<8x128xf32>
    %cst_23 = arith.constant 0.000000e+00 : f32
    %31 = vector.broadcast %cst_23 : f32 to vector<8x128xf32>
    %32 = arith.maximumf %30, %31 : vector<8x128xf32>
    %33 = arith.truncf %32 : vector<8x128xf32> to vector<8x128xbf16>
    %c0_24 = arith.constant 0 : index
    %c0_25 = arith.constant 0 : index
    %34 = vector.load %arg10[%c0_24, %c0_25] : memref<128x128xbf16, #tpu.memory_space<vmem>>, vector<128x128xbf16>
    %cst_26 = arith.constant dense<0.000000e+00> : vector<8x128xf32>
    %35 = tpu.matmul %33, %34, %cst_26 {dimension_numbers = #tpu.dot_dimension_numbers<[1], [0], [0], [1], [0, 0, 1, 1], [], []>} : vector<8x128xbf16>, vector<128x128xbf16>, vector<8x128xf32> -> vector<8x128xf32>
    %c0_27 = arith.constant 0 : index
    %c0_28 = arith.constant 0 : index
    %36 = vector.load %arg11[%c0_27, %c0_28] : memref<1x128xf32, #tpu.memory_space<vmem>>, vector<1x128xf32>
    %37 = vector.broadcast %36 : vector<1x128xf32> to vector<8x128xf32>
    %38 = arith.addf %35, %37 : vector<8x128xf32>
    %39 = arith.truncf %38 : vector<8x128xf32> to vector<8x128xbf16>
    %c0_29 = arith.constant 0 : index
    %c0_30 = arith.constant 0 : index
    %40 = vector.load %arg12[%c0_29, %c0_30] : memref<8x128xbf16, #tpu.memory_space<vmem>>, vector<8x128xbf16>
    tpu.vector_store %arg12[%c0_29, %c0_30], %39 {strides = array<i32>} : memref<8x128xbf16, #tpu.memory_space<vmem>>, vector<8x128xbf16>,
    return
  }
  func.func @transform_0(%arg0: i32) -> (i32, i32) {
    %c0_i32 = arith.constant 0 : i32
    %c0_i32_0 = arith.constant 0 : i32
    return %arg0, %c0_i32 : i32, i32
  }
  func.func @transform_1(%arg0: i32) -> (i32, i32) {
    %c0_i32 = arith.constant 0 : i32
    %c0_i32_0 = arith.constant 0 : i32
    %c0_i32_1 = arith.constant 0 : i32
    return %c0_i32, %c0_i32_0 : i32, i32
  }
  func.func @transform_2(%arg0: i32) -> (i32, i32) {
    %c0_i32 = arith.constant 0 : i32
    %c0_i32_0 = arith.constant 0 : i32
    %c0_i32_1 = arith.constant 0 : i32
    return %c0_i32, %c0_i32_0 : i32, i32
  }
  func.func @transform_3(%arg0: i32) -> (i32, i32) {
    %c0_i32 = arith.constant 0 : i32
    %c0_i32_0 = arith.constant 0 : i32
    %c0_i32_1 = arith.constant 0 : i32
    return %c0_i32, %c0_i32_0 : i32, i32
  }
  func.func @transform_4(%arg0: i32) -> (i32, i32) {
    %c0_i32 = arith.constant 0 : i32
    %c0_i32_0 = arith.constant 0 : i32
    %c0_i32_1 = arith.constant 0 : i32
    return %c0_i32, %c0_i32_0 : i32, i32
  }
  func.func @transform_5(%arg0: i32) -> (i32, i32) {
    %c0_i32 = arith.constant 0 : i32
    %c0_i32_0 = arith.constant 0 : i32
    %c0_i32_1 = arith.constant 0 : i32
    return %c0_i32, %c0_i32_0 : i32, i32
  }
  func.func @transform_6(%arg0: i32) -> (i32, i32) {
    %c0_i32 = arith.constant 0 : i32
    %c0_i32_0 = arith.constant 0 : i32
    %c0_i32_1 = arith.constant 0 : i32
    return %c0_i32, %c0_i32_0 : i32, i32
  }
  func.func @transform_7(%arg0: i32) -> (i32, i32) {
    %c0_i32 = arith.constant 0 : i32
    %c0_i32_0 = arith.constant 0 : i32
    %c0_i32_1 = arith.constant 0 : i32
    return %c0_i32, %c0_i32_0 : i32, i32
  }
  func.func @transform_8(%arg0: i32) -> (i32, i32) {
    %c0_i32 = arith.constant 0 : i32
    %c0_i32_0 = arith.constant 0 : i32
    %c0_i32_1 = arith.constant 0 : i32
    return %c0_i32, %c0_i32_0 : i32, i32
  }
  func.func @transform_9(%arg0: i32) -> (i32, i32) {
    %c0_i32 = arith.constant 0 : i32
    %c0_i32_0 = arith.constant 0 : i32
    %c0_i32_1 = arith.constant 0 : i32
    return %c0_i32, %c0_i32_0 : i32, i32
  }
  func.func @transform_10(%arg0: i32) -> (i32, i32) {
    %c0_i32 = arith.constant 0 : i32
    %c0_i32_0 = arith.constant 0 : i32
    %c0_i32_1 = arith.constant 0 : i32
    return %c0_i32, %c0_i32_0 : i32, i32
  }
  func.func @transform_11(%arg0: i32) -> (i32, i32) {
    %c0_i32 = arith.constant 0 : i32
    %c0_i32_0 = arith.constant 0 : i32
    return %arg0, %c0_i32 : i32, i32
  }
}

</mosaic_0001>

<llo_original>
// kernel: tpu_custom_call.1
$region0: #{tpu_custom_call.1}
  #allocation0 [shape = 'u32[]', space=smem, size = 0x4, offset = 0x4, fixed_abs, tag = 'smem constant byte address 0x4 - core index']
  #allocation1 [shape = 'u32[144,128]{1,0:T(1,128)}', space=vmem, size = 0x12000, scoped, tag = 'internal scratch']
  %s0 = inlined_call_operand.hbm [shape: f32[8,784], index: 0, kind: input, shape index: {}]
  %s1 = inlined_call_operand.hbm [shape: bf16[784,128], index: 1, kind: input, shape index: {}]
  %s2 = inlined_call_operand.vmem [shape: f32[1,128], index: 2, kind: input, shape index: {}]
  %s3 = inlined_call_operand.hbm [shape: bf16[128,128], index: 3, kind: input, shape index: {}]
  %s4 = inlined_call_operand.vmem [shape: f32[1,128], index: 4, kind: input, shape index: {}]
  %s5 = inlined_call_operand.hbm [shape: bf16[128,128], index: 5, kind: input, shape index: {}]
  %s6 = inlined_call_operand.vmem [shape: f32[1,128], index: 6, kind: input, shape index: {}]
  %s7 = inlined_call_operand.hbm [shape: bf16[128,128], index: 7, kind: input, shape index: {}]
  %s8 = inlined_call_operand.vmem [shape: f32[1,128], index: 8, kind: input, shape index: {}]
  %s9 = inlined_call_operand.hbm [shape: bf16[128,128], index: 9, kind: input, shape index: {}]
  %s10 = inlined_call_operand.vmem [shape: f32[1,128], index: 10, kind: input, shape index: {}]
  %s11 = inlined_call_operand.hbm [shape: bf16[8,128], index: 11, kind: output, shape index: {}]
  %s12 = sld [smem:[#allocation0]]
  $region78: #{tpu_custom_call.1} parent=0
    _
  %s14 = ssub.s32 1, %s12
  %s15 = scalar_select 0, %s14, %s12
  $region1: #{tpu_custom_call.1} parent=0
    #allocation2 [shape = 'u8[28672]{0}', space=vmem, size = 0x7000, scoped, tag = 'input window, operand 0, single buffered']
    #allocation3 [shape = 's32[1]{0}', space=sflag, size = 0x4, scoped, tag = 'scoped memory for tpu_custom_call.1']
    #allocation4 [shape = 's32[1]{0}', space=sflag, size = 0x4, scoped, tag = 'scoped memory for tpu_custom_call.1']
    #allocation5 [shape = 'u8[200704]{0}', space=vmem, size = 0x31000, scoped, tag = 'input window, operand 1, single buffered']
    #allocation6 [shape = 's32[1]{0}', space=sflag, size = 0x4, scoped, tag = 'scoped memory for tpu_custom_call.1']
    #allocation7 [shape = 'u8[32768]{0}', space=vmem, size = 0x8000, scoped, tag = 'input window, operand 3, single buffered']
    #allocation8 [shape = 'u8[32768]{0}', space=vmem, size = 0x8000, scoped, tag = 'input window, operand 5, single buffered']
    #allocation9 [shape = 's32[1]{0}', space=sflag, size = 0x4, scoped, tag = 'scoped memory for tpu_custom_call.1']
    #allocation10 [shape = 'u8[32768]{0}', space=vmem, size = 0x8000, scoped, tag = 'input window, operand 7, single buffered']
    #allocation11 [shape = 'u8[32768]{0}', space=vmem, size = 0x8000, scoped, tag = 'input window, operand 9, single buffered']
    #allocation12 [shape = 's32[1]{0}', space=sflag, size = 0x4, scoped, tag = 'scoped memory for tpu_custom_call.1']
    #allocation13 [shape = 'u8[2048]{0}', space=vmem, size = 0x800, scoped, tag = 'output window, operand 0, single buffered']
    %16 = vsyncpa [#allocation3], 0
    %17 = vsyncpa [#allocation6], 0
    %18 = vsyncpa [#allocation9], 0
    %19 = vsyncpa [#allocation12], 0
    %20 = vsyncpa [#allocation4], 0
    // Predicated region
    $region2: #{tpu_custom_call.1} parent=1 // pred_check
      _
    $region3: #{tpu_custom_call.1} parent=1 // pred_check_branch
      %22 = sbr.rel (0) target = $region5
    $region4: #{tpu_custom_call.1} parent=1 // pred_region
      %s24 = ssub.s32 896, 896
      %25 = vsyncadd [#allocation3], %s24
      %s27 = sshll.u32 [#allocation2], 4
      %s28 = int_to_ptr.vmem [resolvable:$true] %s27
      %30 = dma.hbm_to_vmem [thread:$0]  %s0, 896, %s28, [#allocation3]
    $region5: #{tpu_custom_call.1} parent=1 // pred_fallthru
      _
    // Predicated region
    $region6: #{tpu_custom_call.1} parent=1 // pred_check
      _
    $region7: #{tpu_custom_call.1} parent=1 // pred_check_branch
      %32 = sbr.rel (0) target = $region9
    $region8: #{tpu_custom_call.1} parent=1 // pred_region
      %s34 = ssub.s32 6272, 6272
      %35 = vsyncadd [#allocation6], %s34
      %s36 = sshll.u32 [#allocation5], 4
      %s37 = int_to_ptr.vmem [resolvable:$true] %s36
      %42 = dma.hbm_to_vmem [thread:$0]  %s1, 6272, %s37, [#allocation6], 64, 64, 4
    $region9: #{tpu_custom_call.1} parent=1 // pred_fallthru
      _
    // Predicated region
    $region10: #{tpu_custom_call.1} parent=1 // pred_check
      _
    $region11: #{tpu_custom_call.1} parent=1 // pred_check_branch
      %44 = sbr.rel (0) target = $region13
    $region12: #{tpu_custom_call.1} parent=1 // pred_region
      _
    $region13: #{tpu_custom_call.1} parent=1 // pred_fallthru
      _
    // Predicated region
    $region14: #{tpu_custom_call.1} parent=1 // pred_check
      _
    $region15: #{tpu_custom_call.1} parent=1 // pred_check_branch
      %46 = sbr.rel (0) target = $region17
    $region16: #{tpu_custom_call.1} parent=1 // pred_region
      %s48 = ssub.s32 1024, 1024
      %49 = vsyncadd [#allocation6], %s48
      %s50 = sshll.u32 [#allocation7], 4
      %s51 = int_to_ptr.vmem [resolvable:$true] %s50
      %56 = dma.hbm_to_vmem [thread:$0]  %s3, 1024, %s51, [#allocation6], 64, 64, 4
    $region17: #{tpu_custom_call.1} parent=1 // pred_fallthru
      _
    // Predicated region
    $region18: #{tpu_custom_call.1} parent=1 // pred_check
      _
    $region19: #{tpu_custom_call.1} parent=1 // pred_check_branch
      %58 = sbr.rel (0) target = $region21
    $region20: #{tpu_custom_call.1} parent=1 // pred_region
      _
    $region21: #{tpu_custom_call.1} parent=1 // pred_fallthru
      _
    // Predicated region
    $region22: #{tpu_custom_call.1} parent=1 // pred_check
      _
    $region23: #{tpu_custom_call.1} parent=1 // pred_check_branch
      %60 = sbr.rel (0) target = $region25
    $region24: #{tpu_custom_call.1} parent=1 // pred_region
      %s62 = ssub.s32 1024, 1024
      %63 = vsyncadd [#allocation9], %s62
      %s64 = sshll.u32 [#allocation8], 4
      %s65 = int_to_ptr.vmem [resolvable:$true] %s64
      %70 = dma.hbm_to_vmem [thread:$0]  %s5, 1024, %s65, [#allocation9], 64, 64, 4
    $region25: #{tpu_custom_call.1} parent=1 // pred_fallthru
      _
    // Predicated region
    $region26: #{tpu_custom_call.1} parent=1 // pred_check
      _
    $region27: #{tpu_custom_call.1} parent=1 // pred_check_branch
      %72 = sbr.rel (0) target = $region29
    $region28: #{tpu_custom_call.1} parent=1 // pred_region
      _
    $region29: #{tpu_custom_call.1} parent=1 // pred_fallthru
      _
    // Predicated region
    $region30: #{tpu_custom_call.1} parent=1 // pred_check
      _
    $region31: #{tpu_custom_call.1} parent=1 // pred_check_branch
      %74 = sbr.rel (0) target = $region33
    $region32: #{tpu_custom_call.1} parent=1 // pred_region
      %s76 = ssub.s32 1024, 1024
      %77 = vsyncadd [#allocation9], %s76
      %s78 = sshll.u32 [#allocation10], 4
      %s79 = int_to_ptr.vmem [resolvable:$true] %s78
      %84 = dma.hbm_to_vmem [thread:$0]  %s7, 1024, %s79, [#allocation9], 64, 64, 4
    $region33: #{tpu_custom_call.1} parent=1 // pred_fallthru
      _
    // Predicated region
    $region34: #{tpu_custom_call.1} parent=1 // pred_check
      _
    $region35: #{tpu_custom_call.1} parent=1 // pred_check_branch
      %86 = sbr.rel (0) target = $region37
    $region36: #{tpu_custom_call.1} parent=1 // pred_region
      _
    $region37: #{tpu_custom_call.1} parent=1 // pred_fallthru
      _
    // Predicated region
    $region38: #{tpu_custom_call.1} parent=1 // pred_check
      _
    $region39: #{tpu_custom_call.1} parent=1 // pred_check_branch
      %88 = sbr.rel (0) target = $region41
    $region40: #{tpu_custom_call.1} parent=1 // pred_region
      %s90 = ssub.s32 1024, 1024
      %91 = vsyncadd [#allocation12], %s90
      %s92 = sshll.u32 [#allocation11], 4
      %s93 = int_to_ptr.vmem [resolvable:$true] %s92
      %98 = dma.hbm_to_vmem [thread:$0]  %s9, 1024, %s93, [#allocation12], 64, 64, 4
    $region41: #{tpu_custom_call.1} parent=1 // pred_fallthru
      _
    // Predicated region
    $region42: #{tpu_custom_call.1} parent=1 // pred_check
      _
    $region43: #{tpu_custom_call.1} parent=1 // pred_check_branch
      %100 = sbr.rel (0) target = $region45
    $region44: #{tpu_custom_call.1} parent=1 // pred_region
      _
    $region45: #{tpu_custom_call.1} parent=1 // pred_fallthru
      _
    // Predicated region
    $region46: #{tpu_custom_call.1} parent=1 // pred_check
      _
    $region47: #{tpu_custom_call.1} parent=1 // pred_check_branch
      %102 = sbr.rel (0) target = $region49
    $region48: #{tpu_custom_call.1} parent=1 // pred_region
      %103 = dma.done [#allocation3], 896
    $region49: #{tpu_custom_call.1} parent=1 // pred_fallthru
      _
    // Predicated region
    $region50: #{tpu_custom_call.1} parent=1 // pred_check
      _
    $region51: #{tpu_custom_call.1} parent=1 // pred_check_branch
      %105 = sbr.rel (0) target = $region53
    $region52: #{tpu_custom_call.1} parent=1 // pred_region
      %106 = dma.done [#allocation6], 6272
    $region53: #{tpu_custom_call.1} parent=1 // pred_fallthru
      _
    // Predicated region
    $region54: #{tpu_custom_call.1} parent=1 // pred_check
      _
    $region55: #{tpu_custom_call.1} parent=1 // pred_check_branch
      %108 = sbr.rel (0) target = $region57
    $region56: #{tpu_custom_call.1} parent=1 // pred_region
      %109 = dma.done [#allocation6], 1024
    $region57: #{tpu_custom_call.1} parent=1 // pred_fallthru
      _
    // Predicated region
    $region58: #{tpu_custom_call.1} parent=1 // pred_check
      _
    $region59: #{tpu_custom_call.1} parent=1 // pred_check_branch
      %111 = sbr.rel (0) target = $region61
    $region60: #{tpu_custom_call.1} parent=1 // pred_region
      %112 = dma.done [#allocation9], 1024
    $region61: #{tpu_custom_call.1} parent=1 // pred_fallthru
      _
    // Predicated region
    $region62: #{tpu_custom_call.1} parent=1 // pred_check
      _
    $region63: #{tpu_custom_call.1} parent=1 // pred_check_branch
      %114 = sbr.rel (0) target = $region65
    $region64: #{tpu_custom_call.1} parent=1 // pred_region
      %115 = dma.done [#allocation9], 1024
    $region65: #{tpu_custom_call.1} parent=1 // pred_fallthru
      _
    // Predicated region
    $region66: #{tpu_custom_call.1} parent=1 // pred_check
      _
    $region67: #{tpu_custom_call.1} parent=1 // pred_check_branch
      %117 = sbr.rel (0) target = $region69
    $region68: #{tpu_custom_call.1} parent=1 // pred_region
      %118 = dma.done [#allocation12], 1024
    $region69: #{tpu_custom_call.1} parent=1 // pred_fallthru
      _
    %v120 = vld [vmem:[#allocation2] sm:$0xff]
    %v121 = vld [vmem:[#allocation2 + $0x8] sm:$0xff]
    %v122 = vld [vmem:[#allocation2 + $0x10] sm:$0xff]
    %v123 = vld [vmem:[#allocation2 + $0x18] sm:$0xff]
    %v124 = vld [vmem:[#allocation2 + $0x20] sm:$0xff]
    %v125 = vld [vmem:[#allocation2 + $0x28] sm:$0xff]
    %v126 = vld [vmem:[#allocation2 + $0x30] sm:$0xff]
    %v127 = vpack.c.bf16 %v120, %v120
    %v128 = vpack.c.bf16 %v121, %v121
    %v129 = vpack.c.bf16 %v122, %v122
    %v130 = vpack.c.bf16 %v123, %v123
    %v131 = vpack.c.bf16 %v124, %v124
    %v132 = vpack.c.bf16 %v125, %v125
    %v133 = vpack.c.bf16 %v126, %v126
    %v134 = vld [vmem:[#allocation5] sm:$0xf]
    %v135 = vld [vmem:[#allocation5 + $0x4] sm:$0xf]
    %v136 = vld [vmem:[#allocation5 + $0x8] sm:$0xf]
    %v137 = vld [vmem:[#allocation5 + $0xc] sm:$0xf]
    %v138 = vld [vmem:[#allocation5 + $0x10] sm:$0xf]
    %v139 = vld [vmem:[#allocation5 + $0x14] sm:$0xf]
    %v140 = vld [vmem:[#allocation5 + $0x18] sm:$0xf]
    %v141 = vld [vmem:[#allocation5 + $0x1c] sm:$0xf]
    %v142 = vld [vmem:[#allocation5 + $0x20] sm:$0xf]
    %v143 = vld [vmem:[#allocation5 + $0x24] sm:$0xf]
    %v144 = vld [vmem:[#allocation5 + $0x28] sm:$0xf]
    %v145 = vld [vmem:[#allocation5 + $0x2c] sm:$0xf]
    %v146 = vld [vmem:[#allocation5 + $0x30] sm:$0xf]
    %v147 = vld [vmem:[#allocation5 + $0x34] sm:$0xf]
    %v148 = vld [vmem:[#allocation5 + $0x38] sm:$0xf]
    %v149 = vld [vmem:[#allocation5 + $0x3c] sm:$0xf]
    %v150 = vld [vmem:[#allocation5 + $0x40] sm:$0xf]
    %v151 = vld [vmem:[#allocation5 + $0x44] sm:$0xf]
    %v152 = vld [vmem:[#allocation5 + $0x48] sm:$0xf]
    %v153 = vld [vmem:[#allocation5 + $0x4c] sm:$0xf]
    %v154 = vld [vmem:[#allocation5 + $0x50] sm:$0xf]
    %v155 = vld [vmem:[#allocation5 + $0x54] sm:$0xf]
    %v156 = vld [vmem:[#allocation5 + $0x58] sm:$0xf]
    %v157 = vld [vmem:[#allocation5 + $0x5c] sm:$0xf]
    %v158 = vld [vmem:[#allocation5 + $0x60] sm:$0xf]
    %v159 = vld [vmem:[#allocation5 + $0x64] sm:$0xf]
    %v160 = vld [vmem:[#allocation5 + $0x68] sm:$0xf]
    %v161 = vld [vmem:[#allocation5 + $0x6c] sm:$0xf]
    %v162 = vld [vmem:[#allocation5 + $0x70] sm:$0xf]
    %v163 = vld [vmem:[#allocation5 + $0x74] sm:$0xf]
    %v164 = vld [vmem:[#allocation5 + $0x78] sm:$0xf]
    %v165 = vld [vmem:[#allocation5 + $0x7c] sm:$0xf]
    %v166 = vld [vmem:[#allocation5 + $0x80] sm:$0xf]
    %v167 = vld [vmem:[#allocation5 + $0x84] sm:$0xf]
    %v168 = vld [vmem:[#allocation5 + $0x88] sm:$0xf]
    %v169 = vld [vmem:[#allocation5 + $0x8c] sm:$0xf]
    %v170 = vld [vmem:[#allocation5 + $0x90] sm:$0xf]
    %v171 = vld [vmem:[#allocation5 + $0x94] sm:$0xf]
    %v172 = vld [vmem:[#allocation5 + $0x98] sm:$0xf]
    %v173 = vld [vmem:[#allocation5 + $0x9c] sm:$0xf]
    %v174 = vld [vmem:[#allocation5 + $0xa0] sm:$0xf]
    %v175 = vld [vmem:[#allocation5 + $0xa4] sm:$0xf]
    %v176 = vld [vmem:[#allocation5 + $0xa8] sm:$0xf]
    %v177 = vld [vmem:[#allocation5 + $0xac] sm:$0xf]
    %v178 = vld [vmem:[#allocation5 + $0xb0] sm:$0xf]
    %v179 = vld [vmem:[#allocation5 + $0xb4] sm:$0xf]
    %v180 = vld [vmem:[#allocation5 + $0xb8] sm:$0xf]
    %v181 = vld [vmem:[#allocation5 + $0xbc] sm:$0xf]
    %v182 = vld [vmem:[#allocation5 + $0xc0] sm:$0xf]
    %v183 = vld [vmem:[#allocation5 + $0xc4] sm:$0xf]
    %v184 = vld [vmem:[#allocation5 + $0xc8] sm:$0xf]
    %v185 = vld [vmem:[#allocation5 + $0xcc] sm:$0xf]
    %v186 = vld [vmem:[#allocation5 + $0xd0] sm:$0xf]
    %v187 = vld [vmem:[#allocation5 + $0xd4] sm:$0xf]
    %v188 = vld [vmem:[#allocation5 + $0xd8] sm:$0xf]
    %v189 = vld [vmem:[#allocation5 + $0xdc] sm:$0xf]
    %v190 = vld [vmem:[#allocation5 + $0xe0] sm:$0xf]
    %v191 = vld [vmem:[#allocation5 + $0xe4] sm:$0xf]
    %v192 = vld [vmem:[#allocation5 + $0xe8] sm:$0xf]
    %v193 = vld [vmem:[#allocation5 + $0xec] sm:$0xf]
    %v194 = vld [vmem:[#allocation5 + $0xf0] sm:$0xf]
    %v195 = vld [vmem:[#allocation5 + $0xf4] sm:$0xf]
    %v196 = vld [vmem:[#allocation5 + $0xf8] sm:$0xf]
    %v197 = vld [vmem:[#allocation5 + $0xfc] sm:$0xf]
    %v198 = vld [vmem:[#allocation5 + $0x100] sm:$0xf]
    %v199 = vld [vmem:[#allocation5 + $0x104] sm:$0xf]
    %v200 = vld [vmem:[#allocation5 + $0x108] sm:$0xf]
    %v201 = vld [vmem:[#allocation5 + $0x10c] sm:$0xf]
    %v202 = vld [vmem:[#allocation5 + $0x110] sm:$0xf]
    %v203 = vld [vmem:[#allocation5 + $0x114] sm:$0xf]
    %v204 = vld [vmem:[#allocation5 + $0x118] sm:$0xf]
    %v205 = vld [vmem:[#allocation5 + $0x11c] sm:$0xf]
    %v206 = vld [vmem:[#allocation5 + $0x120] sm:$0xf]
    %v207 = vld [vmem:[#allocation5 + $0x124] sm:$0xf]
    %v208 = vld [vmem:[#allocation5 + $0x128] sm:$0xf]
    %v209 = vld [vmem:[#allocation5 + $0x12c] sm:$0xf]
    %v210 = vld [vmem:[#allocation5 + $0x130] sm:$0xf]
    %v211 = vld [vmem:[#allocation5 + $0x134] sm:$0xf]
    %v212 = vld [vmem:[#allocation5 + $0x138] sm:$0xf]
    %v213 = vld [vmem:[#allocation5 + $0x13c] sm:$0xf]
    %v214 = vld [vmem:[#allocation5 + $0x140] sm:$0xf]
    %v215 = vld [vmem:[#allocation5 + $0x144] sm:$0xf]
    %v216 = vld [vmem:[#allocation5 + $0x148] sm:$0xf]
    %v217 = vld [vmem:[#allocation5 + $0x14c] sm:$0xf]
    %v218 = vld [vmem:[#allocation5 + $0x150] sm:$0xf]
    %v219 = vld [vmem:[#allocation5 + $0x154] sm:$0xf]
    %v220 = vld [vmem:[#allocation5 + $0x158] sm:$0xf]
    %v221 = vld [vmem:[#allocation5 + $0x15c] sm:$0xf]
    %v222 = vld [vmem:[#allocation5 + $0x160] sm:$0xf]
    %v223 = vld [vmem:[#allocation5 + $0x164] sm:$0xf]
    %v224 = vld [vmem:[#allocation5 + $0x168] sm:$0xf]
    %v225 = vld [vmem:[#allocation5 + $0x16c] sm:$0xf]
    %v226 = vld [vmem:[#allocation5 + $0x170] sm:$0xf]
    %v227 = vld [vmem:[#allocation5 + $0x174] sm:$0xf]
    %v228 = vld [vmem:[#allocation5 + $0x178] sm:$0xf]
    %v229 = vld [vmem:[#allocation5 + $0x17c] sm:$0xf]
    %v230 = vld [vmem:[#allocation5 + $0x180] sm:$0xf]
    %v231 = vld [vmem:[#allocation5 + $0x184] sm:$0xf]
    %v232 = vld [vmem:[%s2] sm:$0x1]
    %v234 = vlaneseq
    %v235 = vshrl.u32 %v234, 7
    %v236 = vsub.s32 0, %v235
    %v237 = vrot.slane %v232, %v236
    %v337 = vunpack.c.l.b16 %v134
    %v338 = vunpack.c.l.b16 %v135
    %v339 = vunpack.c.l.b16 %v136
    %v340 = vunpack.c.l.b16 %v137
    %v341 = vunpack.c.l.b16 %v138
    %v342 = vunpack.c.l.b16 %v139
    %v343 = vunpack.c.l.b16 %v140
    %v344 = vunpack.c.l.b16 %v141
    %v345 = vunpack.c.l.b16 %v142
    %v346 = vunpack.c.l.b16 %v143
    %v347 = vunpack.c.l.b16 %v144
    %v348 = vunpack.c.l.b16 %v145
    %v349 = vunpack.c.l.b16 %v146
    %v350 = vunpack.c.l.b16 %v147
    %v351 = vunpack.c.l.b16 %v148
    %v352 = vunpack.c.l.b16 %v149
    %v353 = vunpack.c.l.b16 %v150
    %v354 = vunpack.c.l.b16 %v151
    %v355 = vunpack.c.l.b16 %v152
    %v356 = vunpack.c.l.b16 %v153
    %v357 = vunpack.c.l.b16 %v154
    %v358 = vunpack.c.l.b16 %v155
    %v359 = vunpack.c.l.b16 %v156
    %v360 = vunpack.c.l.b16 %v157
    %v361 = vunpack.c.l.b16 %v158
    %v362 = vunpack.c.l.b16 %v159
    %v363 = vunpack.c.l.b16 %v160
    %v364 = vunpack.c.l.b16 %v161
    %v365 = vunpack.c.l.b16 %v162
    %v366 = vunpack.c.l.b16 %v163
    %v367 = vunpack.c.l.b16 %v164
    %v368 = vunpack.c.l.b16 %v165
    %v369 = vunpack.c.l.b16 %v166
    %v370 = vunpack.c.l.b16 %v167
    %v371 = vunpack.c.l.b16 %v168
    %v372 = vunpack.c.l.b16 %v169
    %v373 = vunpack.c.l.b16 %v170
    %v374 = vunpack.c.l.b16 %v171
    %v375 = vunpack.c.l.b16 %v172
    %v376 = vunpack.c.l.b16 %v173
    %v377 = vunpack.c.l.b16 %v174
    %v378 = vunpack.c.l.b16 %v175
    %v379 = vunpack.c.l.b16 %v176
    %v380 = vunpack.c.l.b16 %v177
    %v381 = vunpack.c.l.b16 %v178
    %v382 = vunpack.c.l.b16 %v179
    %v383 = vunpack.c.l.b16 %v180
    %v384 = vunpack.c.l.b16 %v181
    %v385 = vunpack.c.l.b16 %v182
    %v386 = vunpack.c.l.b16 %v183
    %v387 = vunpack.c.l.b16 %v184
    %v388 = vunpack.c.l.b16 %v185
    %v389 = vunpack.c.l.b16 %v186
    %v390 = vunpack.c.l.b16 %v187
    %v391 = vunpack.c.l.b16 %v188
    %v392 = vunpack.c.l.b16 %v189
    %v393 = vunpack.c.l.b16 %v190
    %v394 = vunpack.c.l.b16 %v191
    %v395 = vunpack.c.l.b16 %v192
    %v396 = vunpack.c.l.b16 %v193
    %v397 = vunpack.c.l.b16 %v194
    %v398 = vunpack.c.l.b16 %v195
    %v399 = vunpack.c.l.b16 %v196
    %v400 = vunpack.c.l.b16 %v197
    %v401 = vunpack.c.l.b16 %v198
    %v402 = vunpack.c.l.b16 %v199
    %v403 = vunpack.c.l.b16 %v200
    %v404 = vunpack.c.l.b16 %v201
    %v405 = vunpack.c.l.b16 %v202
    %v406 = vunpack.c.l.b16 %v203
    %v407 = vunpack.c.l.b16 %v204
    %v408 = vunpack.c.l.b16 %v205
    %v409 = vunpack.c.l.b16 %v206
    %v410 = vunpack.c.l.b16 %v207
    %v411 = vunpack.c.l.b16 %v208
    %v412 = vunpack.c.l.b16 %v209
    %v413 = vunpack.c.l.b16 %v210
    %v414 = vunpack.c.l.b16 %v211
    %v415 = vunpack.c.l.b16 %v212
    %v416 = vunpack.c.l.b16 %v213
    %v417 = vunpack.c.l.b16 %v214
    %v418 = vunpack.c.l.b16 %v215
    %v419 = vunpack.c.l.b16 %v216
    %v420 = vunpack.c.l.b16 %v217
    %v421 = vunpack.c.l.b16 %v218
    %v422 = vunpack.c.l.b16 %v219
    %v423 = vunpack.c.l.b16 %v220
    %v424 = vunpack.c.l.b16 %v221
    %v425 = vunpack.c.l.b16 %v222
    %v426 = vunpack.c.l.b16 %v223
    %v427 = vunpack.c.l.b16 %v224
    %v428 = vunpack.c.l.b16 %v225
    %v429 = vunpack.c.l.b16 %v226
    %v430 = vunpack.c.l.b16 %v227
    %v431 = vunpack.c.l.b16 %v228
    %v432 = vunpack.c.l.b16 %v229
    %v433 = vunpack.c.l.b16 %v230
    %v434 = vunpack.c.l.b16 %v231
    %v435 = vpack.c.b16 %v338, %v337
    %v436 = vpack.c.b16 %v340, %v339
    %v437 = vpack.c.b16 %v342, %v341
    %v438 = vpack.c.b16 %v344, %v343
    %v439 = vpack.c.b16 %v346, %v345
    %v440 = vpack.c.b16 %v348, %v347
    %v441 = vpack.c.b16 %v350, %v349
    %v442 = vpack.c.b16 %v352, %v351
    %v443 = vpack.c.b16 %v354, %v353
    %v444 = vpack.c.b16 %v356, %v355
    %v445 = vpack.c.b16 %v358, %v357
    %v446 = vpack.c.b16 %v360, %v359
    %v447 = vpack.c.b16 %v362, %v361
    %v448 = vpack.c.b16 %v364, %v363
    %v449 = vpack.c.b16 %v366, %v365
    %v450 = vpack.c.b16 %v368, %v367
    %v451 = vpack.c.b16 %v370, %v369
    %v452 = vpack.c.b16 %v372, %v371
    %v453 = vpack.c.b16 %v374, %v373
    %v454 = vpack.c.b16 %v376, %v375
    %v455 = vpack.c.b16 %v378, %v377
    %v456 = vpack.c.b16 %v380, %v379
    %v457 = vpack.c.b16 %v382, %v381
    %v458 = vpack.c.b16 %v384, %v383
    %v459 = vpack.c.b16 %v386, %v385
    %v460 = vpack.c.b16 %v388, %v387
    %v461 = vpack.c.b16 %v390, %v389
    %v462 = vpack.c.b16 %v392, %v391
    %v463 = vpack.c.b16 %v394, %v393
    %v464 = vpack.c.b16 %v396, %v395
    %v465 = vpack.c.b16 %v398, %v397
    %v466 = vpack.c.b16 %v400, %v399
    %v467 = vpack.c.b16 %v402, %v401
    %v468 = vpack.c.b16 %v404, %v403
    %v469 = vpack.c.b16 %v406, %v405
    %v470 = vpack.c.b16 %v408, %v407
    %v471 = vpack.c.b16 %v410, %v409
    %v472 = vpack.c.b16 %v412, %v411
    %v473 = vpack.c.b16 %v414, %v413
    %v474 = vpack.c.b16 %v416, %v415
    %v475 = vpack.c.b16 %v418, %v417
    %v476 = vpack.c.b16 %v420, %v419
    %v477 = vpack.c.b16 %v422, %v421
    %v478 = vpack.c.b16 %v424, %v423
    %v479 = vpack.c.b16 %v426, %v425
    %v480 = vpack.c.b16 %v428, %v427
    %v481 = vpack.c.b16 %v430, %v429
    %v482 = vpack.c.b16 %v432, %v431
    %v483 = vpack.c.b16 %v434, %v433
    %vm533 = vcmask 130048
    %v535 = vsel %vm533, %v133, 0
    %537 = vmatprep.subr.bf16.mxu0 0
    %538 = vmatpush1.bf16.msra.mxu0 %v435
    %539 = vmatprep.subr.bf16.mxu0 0
    %540 = vmatpush1.bf16.msra.mxu0 %v436
    %541 = vmatprep.subr.bf16.mxu0 0
    %542 = vmatpush1.bf16.msra.mxu0 %v437
    %543 = vmatprep.subr.bf16.mxu0 0
    %544 = vmatpush1.bf16.msra.mxu0 %v438
    %545 = vmatprep.subr.bf16.mxu0 0
    %546 = vmatpush1.bf16.msra.mxu0 %v439
    %547 = vmatprep.subr.bf16.mxu0 0
    %548 = vmatpush1.bf16.msra.mxu0 %v440
    %549 = vmatprep.subr.bf16.mxu0 0
    %550 = vmatpush1.bf16.msra.mxu0 %v441
    %551 = vmatprep.subr.bf16.mxu0 0
    %552 = vmatpush1.bf16.msra.mxu0 %v442
    %553 = vmatprep.subr.bf16.mxu0 0
    %554 = vmatpush1.bf16.msra.mxu0 %v443
    %555 = vmatprep.subr.bf16.mxu0 0
    %556 = vmatpush1.bf16.msra.mxu0 %v444
    %557 = vmatprep.subr.bf16.mxu0 0
    %558 = vmatpush1.bf16.msra.mxu0 %v445
    %559 = vmatprep.subr.bf16.mxu0 0
    %560 = vmatpush1.bf16.msra.mxu0 %v446
    %561 = vmatprep.subr.bf16.mxu0 0
    %562 = vmatpush1.bf16.msra.mxu0 %v447
    %563 = vmatprep.subr.bf16.mxu0 0
    %564 = vmatpush1.bf16.msra.mxu0 %v448
    %565 = vmatprep.subr.bf16.mxu0 0
    %566 = vmatpush1.bf16.msra.mxu0 %v449
    %567 = vmatprep.subr.bf16.mxu0 0
    %568 = vmatpush1.bf16.msra.mxu0 %v450
    %569 = vmatprep.mubr.bf16.mxu0 %v128
    %570 = vmatmul.mubr.bf16.gmra.mrb[0].mxu0 %v127
    %v571 = vpop.f32.mrb[0].mxu0
    %v572 = vadd.f32 %v237, %v571
    %v573 = vpop.f32.mrb[0].mxu0
    %v574 = vpop.f32.mrb[0].mxu0
    %v575 = vpop.f32.mrb[0].mxu0
    %576 = vdwg.mxu0
    %577 = vmatprep.subr.bf16.mxu0 0
    %578 = vmatpush1.bf16.msra.mxu0 %v451
    %579 = vmatprep.subr.bf16.mxu0 0
    %580 = vmatpush1.bf16.msra.mxu0 %v452
    %581 = vmatprep.subr.bf16.mxu0 0
    %582 = vmatpush1.bf16.msra.mxu0 %v453
    %583 = vmatprep.subr.bf16.mxu0 0
    %584 = vmatpush1.bf16.msra.mxu0 %v454
    %585 = vmatprep.subr.bf16.mxu0 0
    %586 = vmatpush1.bf16.msra.mxu0 %v455
    %587 = vmatprep.subr.bf16.mxu0 0
    %588 = vmatpush1.bf16.msra.mxu0 %v456
    %589 = vmatprep.subr.bf16.mxu0 0
    %590 = vmatpush1.bf16.msra.mxu0 %v457
    %591 = vmatprep.subr.bf16.mxu0 0
    %592 = vmatpush1.bf16.msra.mxu0 %v458
    %593 = vmatprep.subr.bf16.mxu0 0
    %594 = vmatpush1.bf16.msra.mxu0 %v459
    %595 = vmatprep.subr.bf16.mxu0 0
    %596 = vmatpush1.bf16.msra.mxu0 %v460
    %597 = vmatprep.subr.bf16.mxu0 0
    %598 = vmatpush1.bf16.msra.mxu0 %v461
    %599 = vmatprep.subr.bf16.mxu0 0
    %600 = vmatpush1.bf16.msra.mxu0 %v462
    %601 = vmatprep.subr.bf16.mxu0 0
    %602 = vmatpush1.bf16.msra.mxu0 %v463
    %603 = vmatprep.subr.bf16.mxu0 0
    %604 = vmatpush1.bf16.msra.mxu0 %v464
    %605 = vmatprep.subr.bf16.mxu0 0
    %606 = vmatpush1.bf16.msra.mxu0 %v465
    %607 = vmatprep.subr.bf16.mxu0 0
    %608 = vmatpush1.bf16.msra.mxu0 %v466
    %609 = vmatprep.mubr.bf16.mxu0 %v130
    %610 = vmatmul.mubr.bf16.gmra.mrb[0].mxu0 %v129
    %v611 = vpop.f32.mrb[0].mxu0
    %v612 = vadd.f32 %v572, %v611
    %v613 = vpop.f32.mrb[0].mxu0
    %v614 = vpop.f32.mrb[0].mxu0
    %v615 = vpop.f32.mrb[0].mxu0
    %616 = vdwg.mxu0
    %617 = vmatprep.subr.bf16.mxu0 0
    %618 = vmatpush1.bf16.msra.mxu0 %v467
    %619 = vmatprep.subr.bf16.mxu0 0
    %620 = vmatpush1.bf16.msra.mxu0 %v468
    %621 = vmatprep.subr.bf16.mxu0 0
    %622 = vmatpush1.bf16.msra.mxu0 %v469
    %623 = vmatprep.subr.bf16.mxu0 0
    %624 = vmatpush1.bf16.msra.mxu0 %v470
    %625 = vmatprep.subr.bf16.mxu0 0
    %626 = vmatpush1.bf16.msra.mxu0 %v471
    %627 = vmatprep.subr.bf16.mxu0 0
    %628 = vmatpush1.bf16.msra.mxu0 %v472
    %629 = vmatprep.subr.bf16.mxu0 0
    %630 = vmatpush1.bf16.msra.mxu0 %v473
    %631 = vmatprep.subr.bf16.mxu0 0
    %632 = vmatpush1.bf16.msra.mxu0 %v474
    %633 = vmatprep.subr.bf16.mxu0 0
    %634 = vmatpush1.bf16.msra.mxu0 %v475
    %635 = vmatprep.subr.bf16.mxu0 0
    %636 = vmatpush1.bf16.msra.mxu0 %v476
    %637 = vmatprep.subr.bf16.mxu0 0
    %638 = vmatpush1.bf16.msra.mxu0 %v477
    %639 = vmatprep.subr.bf16.mxu0 0
    %640 = vmatpush1.bf16.msra.mxu0 %v478
    %641 = vmatprep.subr.bf16.mxu0 0
    %642 = vmatpush1.bf16.msra.mxu0 %v479
    %643 = vmatprep.subr.bf16.mxu0 0
    %644 = vmatpush1.bf16.msra.mxu0 %v480
    %645 = vmatprep.subr.bf16.mxu0 0
    %646 = vmatpush1.bf16.msra.mxu0 %v481
    %647 = vmatprep.subr.bf16.mxu0 0
    %648 = vmatpush1.bf16.msra.mxu0 %v482
    %649 = vmatprep.mubr.bf16.mxu0 %v132
    %650 = vmatmul.mubr.bf16.gmra.mrb[0].mxu0 %v131
    %v651 = vpop.f32.mrb[0].mxu0
    %v652 = vadd.f32 %v612, %v651
    %v653 = vpop.f32.mrb[0].mxu0
    %v654 = vpop.f32.mrb[0].mxu0
    %v655 = vpop.f32.mrb[0].mxu0
    %656 = vdwg.mxu0
    %657 = vmatprep.subr.bf16.mxu0 0
    %658 = vmatpush1.bf16.msra.mxu0 %v483
    %659 = vmatprep.subr.bf16.mxu0 0
    %660 = vmatpush1.bf16.msra.mxu0 0
    %661 = vmatprep.subr.bf16.mxu0 0
    %662 = vmatpush1.bf16.msra.mxu0 0
    %663 = vmatprep.subr.bf16.mxu0 0
    %664 = vmatpush1.bf16.msra.mxu0 0
    %665 = vmatprep.subr.bf16.mxu0 0
    %666 = vmatpush1.bf16.msra.mxu0 0
    %667 = vmatprep.subr.bf16.mxu0 0
    %668 = vmatpush1.bf16.msra.mxu0 0
    %669 = vmatprep.subr.bf16.mxu0 0
    %670 = vmatpush1.bf16.msra.mxu0 0
    %671 = vmatprep.subr.bf16.mxu0 0
    %672 = vmatpush1.bf16.msra.mxu0 0
    %673 = vmatprep.subr.bf16.mxu0 0
    %674 = vmatpush1.bf16.msra.mxu0 0
    %675 = vmatprep.subr.bf16.mxu0 0
    %676 = vmatpush1.bf16.msra.mxu0 0
    %677 = vmatprep.subr.bf16.mxu0 0
    %678 = vmatpush1.bf16.msra.mxu0 0
    %679 = vmatprep.subr.bf16.mxu0 0
    %680 = vmatpush1.bf16.msra.mxu0 0
    %681 = vmatprep.subr.bf16.mxu0 0
    %682 = vmatpush1.bf16.msra.mxu0 0
    %683 = vmatprep.subr.bf16.mxu0 0
    %684 = vmatpush1.bf16.msra.mxu0 0
    %685 = vmatprep.subr.bf16.mxu0 0
    %686 = vmatpush1.bf16.msra.mxu0 0
    %687 = vmatprep.subr.bf16.mxu0 0
    %688 = vmatpush1.bf16.msra.mxu0 0
    %689 = vmatprep.mubr.bf16.mxu0 0
    %690 = vmatmul.mubr.bf16.gmra.mrb[0].mxu0 %v535
    %v691 = vpop.f32.mrb[0].mxu0
    %v692 = vadd.f32 %v652, %v691
    %v693 = vpop.f32.mrb[0].mxu0
    %v694 = vpop.f32.mrb[0].mxu0
    %v695 = vpop.f32.mrb[0].mxu0
    %696 = vdwg.mxu0
    %v697 = vmax.f32 %v692, 0.0
    %v698 = vpack.c.bf16 %v697, %v697
    %v699 = vld [vmem:[#allocation7] sm:$0xf]
    %v700 = vld [vmem:[#allocation7 + $0x4] sm:$0xf]
    %v701 = vld [vmem:[#allocation7 + $0x8] sm:$0xf]
    %v702 = vld [vmem:[#allocation7 + $0xc] sm:$0xf]
    %v703 = vld [vmem:[#allocation7 + $0x10] sm:$0xf]
    %v704 = vld [vmem:[#allocation7 + $0x14] sm:$0xf]
    %v705 = vld [vmem:[#allocation7 + $0x18] sm:$0xf]
    %v706 = vld [vmem:[#allocation7 + $0x1c] sm:$0xf]
    %v707 = vld [vmem:[#allocation7 + $0x20] sm:$0xf]
    %v708 = vld [vmem:[#allocation7 + $0x24] sm:$0xf]
    %v709 = vld [vmem:[#allocation7 + $0x28] sm:$0xf]
    %v710 = vld [vmem:[#allocation7 + $0x2c] sm:$0xf]
    %v711 = vld [vmem:[#allocation7 + $0x30] sm:$0xf]
    %v712 = vld [vmem:[#allocation7 + $0x34] sm:$0xf]
    %v713 = vld [vmem:[#allocation7 + $0x38] sm:$0xf]
    %v714 = vld [vmem:[#allocation7 + $0x3c] sm:$0xf]
    %v715 = vld [vmem:[%s4] sm:$0x1]
    %v717 = vlaneseq
    %v718 = vshrl.u32 %v717, 7
    %v719 = vsub.s32 0, %v718
    %v720 = vrot.slane %v715, %v719
    %v738 = vunpack.c.l.b16 %v699
    %v739 = vunpack.c.l.b16 %v700
    %v740 = vunpack.c.l.b16 %v701
    %v741 = vunpack.c.l.b16 %v702
    %v742 = vunpack.c.l.b16 %v703
    %v743 = vunpack.c.l.b16 %v704
    %v744 = vunpack.c.l.b16 %v705
    %v745 = vunpack.c.l.b16 %v706
    %v746 = vunpack.c.l.b16 %v707
    %v747 = vunpack.c.l.b16 %v708
    %v748 = vunpack.c.l.b16 %v709
    %v749 = vunpack.c.l.b16 %v710
    %v750 = vunpack.c.l.b16 %v711
    %v751 = vunpack.c.l.b16 %v712
    %v752 = vunpack.c.l.b16 %v713
    %v753 = vunpack.c.l.b16 %v714
    %v754 = vpack.c.b16 %v739, %v738
    %v755 = vpack.c.b16 %v741, %v740
    %v756 = vpack.c.b16 %v743, %v742
    %v757 = vpack.c.b16 %v745, %v744
    %v758 = vpack.c.b16 %v747, %v746
    %v759 = vpack.c.b16 %v749, %v748
    %v760 = vpack.c.b16 %v751, %v750
    %v761 = vpack.c.b16 %v753, %v752
    %770 = vmatprep.subr.bf16.mxu0 0
    %771 = vmatpush1.bf16.msra.mxu0 %v754
    %772 = vmatprep.subr.bf16.mxu0 0
    %773 = vmatpush1.bf16.msra.mxu0 %v755
    %774 = vmatprep.subr.bf16.mxu0 0
    %775 = vmatpush1.bf16.msra.mxu0 %v756
    %776 = vmatprep.subr.bf16.mxu0 0
    %777 = vmatpush1.bf16.msra.mxu0 %v757
    %778 = vmatprep.subr.bf16.mxu0 0
    %779 = vmatpush1.bf16.msra.mxu0 %v758
    %780 = vmatprep.subr.bf16.mxu0 0
    %781 = vmatpush1.bf16.msra.mxu0 %v759
    %782 = vmatprep.subr.bf16.mxu0 0
    %783 = vmatpush1.bf16.msra.mxu0 %v760
    %784 = vmatprep.subr.bf16.mxu0 0
    %785 = vmatpush1.bf16.msra.mxu0 %v761
    %786 = vmatprep.subr.bf16.mxu0 0
    %787 = vmatpush1.bf16.msra.mxu0 0
    %788 = vmatprep.subr.bf16.mxu0 0
    %789 = vmatpush1.bf16.msra.mxu0 0
    %790 = vmatprep.subr.bf16.mxu0 0
    %791 = vmatpush1.bf16.msra.mxu0 0
    %792 = vmatprep.subr.bf16.mxu0 0
    %793 = vmatpush1.bf16.msra.mxu0 0
    %794 = vmatprep.subr.bf16.mxu0 0
    %795 = vmatpush1.bf16.msra.mxu0 0
    %796 = vmatprep.subr.bf16.mxu0 0
    %797 = vmatpush1.bf16.msra.mxu0 0
    %798 = vmatprep.subr.bf16.mxu0 0
    %799 = vmatpush1.bf16.msra.mxu0 0
    %800 = vmatprep.subr.bf16.mxu0 0
    %801 = vmatpush1.bf16.msra.mxu0 0
    %802 = vmatprep.mubr.bf16.mxu0 0
    %803 = vmatmul.mubr.bf16.gmra.mrb[0].mxu0 %v698
    %v804 = vpop.f32.mrb[0].mxu0
    %v805 = vadd.f32 %v720, %v804
    %v806 = vpop.f32.mrb[0].mxu0
    %v807 = vpop.f32.mrb[0].mxu0
    %v808 = vpop.f32.mrb[0].mxu0
    %809 = vdwg.mxu0
    %v810 = vmax.f32 %v805, 0.0
    %v811 = vpack.c.bf16 %v810, %v810
    %v812 = vld [vmem:[#allocation8] sm:$0xf]
    %v813 = vld [vmem:[#allocation8 + $0x4] sm:$0xf]
    %v814 = vld [vmem:[#allocation8 + $0x8] sm:$0xf]
    %v815 = vld [vmem:[#allocation8 + $0xc] sm:$0xf]
    %v816 = vld [vmem:[#allocation8 + $0x10] sm:$0xf]
    %v817 = vld [vmem:[#allocation8 + $0x14] sm:$0xf]
    %v818 = vld [vmem:[#allocation8 + $0x18] sm:$0xf]
    %v819 = vld [vmem:[#allocation8 + $0x1c] sm:$0xf]
    %v820 = vld [vmem:[#allocation8 + $0x20] sm:$0xf]
    %v821 = vld [vmem:[#allocation8 + $0x24] sm:$0xf]
    %v822 = vld [vmem:[#allocation8 + $0x28] sm:$0xf]
    %v823 = vld [vmem:[#allocation8 + $0x2c] sm:$0xf]
    %v824 = vld [vmem:[#allocation8 + $0x30] sm:$0xf]
    %v825 = vld [vmem:[#allocation8 + $0x34] sm:$0xf]
    %v826 = vld [vmem:[#allocation8 + $0x38] sm:$0xf]
    %v827 = vld [vmem:[#allocation8 + $0x3c] sm:$0xf]
    %v828 = vld [vmem:[%s6] sm:$0x1]
    %v830 = vlaneseq
    %v831 = vshrl.u32 %v830, 7
    %v832 = vsub.s32 0, %v831
    %v833 = vrot.slane %v828, %v832
    %v851 = vunpack.c.l.b16 %v812
    %v852 = vunpack.c.l.b16 %v813
    %v853 = vunpack.c.l.b16 %v814
    %v854 = vunpack.c.l.b16 %v815
    %v855 = vunpack.c.l.b16 %v816
    %v856 = vunpack.c.l.b16 %v817
    %v857 = vunpack.c.l.b16 %v818
    %v858 = vunpack.c.l.b16 %v819
    %v859 = vunpack.c.l.b16 %v820
    %v860 = vunpack.c.l.b16 %v821
    %v861 = vunpack.c.l.b16 %v822
    %v862 = vunpack.c.l.b16 %v823
    %v863 = vunpack.c.l.b16 %v824
    %v864 = vunpack.c.l.b16 %v825
    %v865 = vunpack.c.l.b16 %v826
    %v866 = vunpack.c.l.b16 %v827
    %v867 = vpack.c.b16 %v852, %v851
    %v868 = vpack.c.b16 %v854, %v853
    %v869 = vpack.c.b16 %v856, %v855
    %v870 = vpack.c.b16 %v858, %v857
    %v871 = vpack.c.b16 %v860, %v859
    %v872 = vpack.c.b16 %v862, %v861
    %v873 = vpack.c.b16 %v864, %v863
    %v874 = vpack.c.b16 %v866, %v865
    %883 = vmatprep.subr.bf16.mxu0 0
    %884 = vmatpush1.bf16.msra.mxu0 %v867
    %885 = vmatprep.subr.bf16.mxu0 0
    %886 = vmatpush1.bf16.msra.mxu0 %v868
    %887 = vmatprep.subr.bf16.mxu0 0
    %888 = vmatpush1.bf16.msra.mxu0 %v869
    %889 = vmatprep.subr.bf16.mxu0 0
    %890 = vmatpush1.bf16.msra.mxu0 %v870
    %891 = vmatprep.subr.bf16.mxu0 0
    %892 = vmatpush1.bf16.msra.mxu0 %v871
    %893 = vmatprep.subr.bf16.mxu0 0
    %894 = vmatpush1.bf16.msra.mxu0 %v872
    %895 = vmatprep.subr.bf16.mxu0 0
    %896 = vmatpush1.bf16.msra.mxu0 %v873
    %897 = vmatprep.subr.bf16.mxu0 0
    %898 = vmatpush1.bf16.msra.mxu0 %v874
    %899 = vmatprep.subr.bf16.mxu0 0
    %900 = vmatpush1.bf16.msra.mxu0 0
    %901 = vmatprep.subr.bf16.mxu0 0
    %902 = vmatpush1.bf16.msra.mxu0 0
    %903 = vmatprep.subr.bf16.mxu0 0
    %904 = vmatpush1.bf16.msra.mxu0 0
    %905 = vmatprep.subr.bf16.mxu0 0
    %906 = vmatpush1.bf16.msra.mxu0 0
    %907 = vmatprep.subr.bf16.mxu0 0
    %908 = vmatpush1.bf16.msra.mxu0 0
    %909 = vmatprep.subr.bf16.mxu0 0
    %910 = vmatpush1.bf16.msra.mxu0 0
    %911 = vmatprep.subr.bf16.mxu0 0
    %912 = vmatpush1.bf16.msra.mxu0 0
    %913 = vmatprep.subr.bf16.mxu0 0
    %914 = vmatpush1.bf16.msra.mxu0 0
    %915 = vmatprep.mubr.bf16.mxu0 0
    %916 = vmatmul.mubr.bf16.gmra.mrb[0].mxu0 %v811
    %v917 = vpop.f32.mrb[0].mxu0
    %v918 = vadd.f32 %v833, %v917
    %v919 = vpop.f32.mrb[0].mxu0
    %v920 = vpop.f32.mrb[0].mxu0
    %v921 = vpop.f32.mrb[0].mxu0
    %922 = vdwg.mxu0
    %v923 = vmax.f32 %v918, 0.0
    %v924 = vpack.c.bf16 %v923, %v923
    %v925 = vld [vmem:[#allocation10] sm:$0xf]
    %v926 = vld [vmem:[#allocation10 + $0x4] sm:$0xf]
    %v927 = vld [vmem:[#allocation10 + $0x8] sm:$0xf]
    %v928 = vld [vmem:[#allocation10 + $0xc] sm:$0xf]
    %v929 = vld [vmem:[#allocation10 + $0x10] sm:$0xf]
    %v930 = vld [vmem:[#allocation10 + $0x14] sm:$0xf]
    %v931 = vld [vmem:[#allocation10 + $0x18] sm:$0xf]
    %v932 = vld [vmem:[#allocation10 + $0x1c] sm:$0xf]
    %v933 = vld [vmem:[#allocation10 + $0x20] sm:$0xf]
    %v934 = vld [vmem:[#allocation10 + $0x24] sm:$0xf]
    %v935 = vld [vmem:[#allocation10 + $0x28] sm:$0xf]
    %v936 = vld [vmem:[#allocation10 + $0x2c] sm:$0xf]
    %v937 = vld [vmem:[#allocation10 + $0x30] sm:$0xf]
    %v938 = vld [vmem:[#allocation10 + $0x34] sm:$0xf]
    %v939 = vld [vmem:[#allocation10 + $0x38] sm:$0xf]
    %v940 = vld [vmem:[#allocation10 + $0x3c] sm:$0xf]
    %v941 = vld [vmem:[%s8] sm:$0x1]
    %v943 = vlaneseq
    %v944 = vshrl.u32 %v943, 7
    %v945 = vsub.s32 0, %v944
    %v946 = vrot.slane %v941, %v945
    %v964 = vunpack.c.l.b16 %v925
    %v965 = vunpack.c.l.b16 %v926
    %v966 = vunpack.c.l.b16 %v927
    %v967 = vunpack.c.l.b16 %v928
    %v968 = vunpack.c.l.b16 %v929
    %v969 = vunpack.c.l.b16 %v930
    %v970 = vunpack.c.l.b16 %v931
    %v971 = vunpack.c.l.b16 %v932
    %v972 = vunpack.c.l.b16 %v933
    %v973 = vunpack.c.l.b16 %v934
    %v974 = vunpack.c.l.b16 %v935
    %v975 = vunpack.c.l.b16 %v936
    %v976 = vunpack.c.l.b16 %v937
    %v977 = vunpack.c.l.b16 %v938
    %v978 = vunpack.c.l.b16 %v939
    %v979 = vunpack.c.l.b16 %v940
    %v980 = vpack.c.b16 %v965, %v964
    %v981 = vpack.c.b16 %v967, %v966
    %v982 = vpack.c.b16 %v969, %v968
    %v983 = vpack.c.b16 %v971, %v970
    %v984 = vpack.c.b16 %v973, %v972
    %v985 = vpack.c.b16 %v975, %v974
    %v986 = vpack.c.b16 %v977, %v976
    %v987 = vpack.c.b16 %v979, %v978
    %996 = vmatprep.subr.bf16.mxu0 0
    %997 = vmatpush1.bf16.msra.mxu0 %v980
    %998 = vmatprep.subr.bf16.mxu0 0
    %999 = vmatpush1.bf16.msra.mxu0 %v981
    %1000 = vmatprep.subr.bf16.mxu0 0
    %1001 = vmatpush1.bf16.msra.mxu0 %v982
    %1002 = vmatprep.subr.bf16.mxu0 0
    %1003 = vmatpush1.bf16.msra.mxu0 %v983
    %1004 = vmatprep.subr.bf16.mxu0 0
    %1005 = vmatpush1.bf16.msra.mxu0 %v984
    %1006 = vmatprep.subr.bf16.mxu0 0
    %1007 = vmatpush1.bf16.msra.mxu0 %v985
    %1008 = vmatprep.subr.bf16.mxu0 0
    %1009 = vmatpush1.bf16.msra.mxu0 %v986
    %1010 = vmatprep.subr.bf16.mxu0 0
    %1011 = vmatpush1.bf16.msra.mxu0 %v987
    %1012 = vmatprep.subr.bf16.mxu0 0
    %1013 = vmatpush1.bf16.msra.mxu0 0
    %1014 = vmatprep.subr.bf16.mxu0 0
    %1015 = vmatpush1.bf16.msra.mxu0 0
    %1016 = vmatprep.subr.bf16.mxu0 0
    %1017 = vmatpush1.bf16.msra.mxu0 0
    %1018 = vmatprep.subr.bf16.mxu0 0
    %1019 = vmatpush1.bf16.msra.mxu0 0
    %1020 = vmatprep.subr.bf16.mxu0 0
    %1021 = vmatpush1.bf16.msra.mxu0 0
    %1022 = vmatprep.subr.bf16.mxu0 0
    %1023 = vmatpush1.bf16.msra.mxu0 0
    %1024 = vmatprep.subr.bf16.mxu0 0
    %1025 = vmatpush1.bf16.msra.mxu0 0
    %1026 = vmatprep.subr.bf16.mxu0 0
    %1027 = vmatpush1.bf16.msra.mxu0 0
    %1028 = vmatprep.mubr.bf16.mxu0 0
    %1029 = vmatmul.mubr.bf16.gmra.mrb[0].mxu0 %v924
    %v1030 = vpop.f32.mrb[0].mxu0
    %v1031 = vadd.f32 %v946, %v1030
    %v1032 = vpop.f32.mrb[0].mxu0
    %v1033 = vpop.f32.mrb[0].mxu0
    %v1034 = vpop.f32.mrb[0].mxu0
    %1035 = vdwg.mxu0
    %v1036 = vmax.f32 %v1031, 0.0
    %v1037 = vpack.c.bf16 %v1036, %v1036
    %v1038 = vld [vmem:[#allocation11] sm:$0xf]
    %v1039 = vld [vmem:[#allocation11 + $0x4] sm:$0xf]
    %v1040 = vld [vmem:[#allocation11 + $0x8] sm:$0xf]
    %v1041 = vld [vmem:[#allocation11 + $0xc] sm:$0xf]
    %v1042 = vld [vmem:[#allocation11 + $0x10] sm:$0xf]
    %v1043 = vld [vmem:[#allocation11 + $0x14] sm:$0xf]
    %v1044 = vld [vmem:[#allocation11 + $0x18] sm:$0xf]
    %v1045 = vld [vmem:[#allocation11 + $0x1c] sm:$0xf]
    %v1046 = vld [vmem:[#allocation11 + $0x20] sm:$0xf]
    %v1047 = vld [vmem:[#allocation11 + $0x24] sm:$0xf]
    %v1048 = vld [vmem:[#allocation11 + $0x28] sm:$0xf]
    %v1049 = vld [vmem:[#allocation11 + $0x2c] sm:$0xf]
    %v1050 = vld [vmem:[#allocation11 + $0x30] sm:$0xf]
    %v1051 = vld [vmem:[#allocation11 + $0x34] sm:$0xf]
    %v1052 = vld [vmem:[#allocation11 + $0x38] sm:$0xf]
    %v1053 = vld [vmem:[#allocation11 + $0x3c] sm:$0xf]
    %v1054 = vld [vmem:[%s10] sm:$0x1]
    %v1056 = vlaneseq
    %v1057 = vshrl.u32 %v1056, 7
    %v1058 = vsub.s32 0, %v1057
    %v1059 = vrot.slane %v1054, %v1058
    %v1077 = vunpack.c.l.b16 %v1038
    %v1078 = vunpack.c.l.b16 %v1039
    %v1079 = vunpack.c.l.b16 %v1040
    %v1080 = vunpack.c.l.b16 %v1041
    %v1081 = vunpack.c.l.b16 %v1042
    %v1082 = vunpack.c.l.b16 %v1043
    %v1083 = vunpack.c.l.b16 %v1044
    %v1084 = vunpack.c.l.b16 %v1045
    %v1085 = vunpack.c.l.b16 %v1046
    %v1086 = vunpack.c.l.b16 %v1047
    %v1087 = vunpack.c.l.b16 %v1048
    %v1088 = vunpack.c.l.b16 %v1049
    %v1089 = vunpack.c.l.b16 %v1050
    %v1090 = vunpack.c.l.b16 %v1051
    %v1091 = vunpack.c.l.b16 %v1052
    %v1092 = vunpack.c.l.b16 %v1053
    %v1093 = vpack.c.b16 %v1078, %v1077
    %v1094 = vpack.c.b16 %v1080, %v1079
    %v1095 = vpack.c.b16 %v1082, %v1081
    %v1096 = vpack.c.b16 %v1084, %v1083
    %v1097 = vpack.c.b16 %v1086, %v1085
    %v1098 = vpack.c.b16 %v1088, %v1087
    %v1099 = vpack.c.b16 %v1090, %v1089
    %v1100 = vpack.c.b16 %v1092, %v1091
    %1109 = vmatprep.subr.bf16.mxu0 0
    %1110 = vmatpush1.bf16.msra.mxu0 %v1093
    %1111 = vmatprep.subr.bf16.mxu0 0
    %1112 = vmatpush1.bf16.msra.mxu0 %v1094
    %1113 = vmatprep.subr.bf16.mxu0 0
    %1114 = vmatpush1.bf16.msra.mxu0 %v1095
    %1115 = vmatprep.subr.bf16.mxu0 0
    %1116 = vmatpush1.bf16.msra.mxu0 %v1096
    %1117 = vmatprep.subr.bf16.mxu0 0
    %1118 = vmatpush1.bf16.msra.mxu0 %v1097
    %1119 = vmatprep.subr.bf16.mxu0 0
    %1120 = vmatpush1.bf16.msra.mxu0 %v1098
    %1121 = vmatprep.subr.bf16.mxu0 0
    %1122 = vmatpush1.bf16.msra.mxu0 %v1099
    %1123 = vmatprep.subr.bf16.mxu0 0
    %1124 = vmatpush1.bf16.msra.mxu0 %v1100
    %1125 = vmatprep.subr.bf16.mxu0 0
    %1126 = vmatpush1.bf16.msra.mxu0 0
    %1127 = vmatprep.subr.bf16.mxu0 0
    %1128 = vmatpush1.bf16.msra.mxu0 0
    %1129 = vmatprep.subr.bf16.mxu0 0
    %1130 = vmatpush1.bf16.msra.mxu0 0
    %1131 = vmatprep.subr.bf16.mxu0 0
    %1132 = vmatpush1.bf16.msra.mxu0 0
    %1133 = vmatprep.subr.bf16.mxu0 0
    %1134 = vmatpush1.bf16.msra.mxu0 0
    %1135 = vmatprep.subr.bf16.mxu0 0
    %1136 = vmatpush1.bf16.msra.mxu0 0
    %1137 = vmatprep.subr.bf16.mxu0 0
    %1138 = vmatpush1.bf16.msra.mxu0 0
    %1139 = vmatprep.subr.bf16.mxu0 0
    %1140 = vmatpush1.bf16.msra.mxu0 0
    %1141 = vmatprep.mubr.bf16.mxu0 0
    %1142 = vmatmul.mubr.bf16.gmra.mrb[0].mxu0 %v1037
    %v1143 = vpop.f32.mrb[0].mxu0
    %v1144 = vadd.f32 %v1059, %v1143
    %v1145 = vpop.f32.mrb[0].mxu0
    %v1146 = vpop.f32.mrb[0].mxu0
    %v1147 = vpop.f32.mrb[0].mxu0
    %1148 = vdwg.mxu0
    %v1149 = vpack.c.bf16 %v1144, %v1144
    %1150 = vst [vmem:[#allocation13] sm:$0xf] %v1149
    // Predicated region
    $region70: #{tpu_custom_call.1} parent=1 // pred_check
      _
    $region71: #{tpu_custom_call.1} parent=1 // pred_check_branch
      %1152 = sbr.rel (0) target = $region73
    $region72: #{tpu_custom_call.1} parent=1 // pred_region
      %s1154 = ssub.s32 64, 64
      %1155 = vsyncadd [#allocation4], %s1154
      %s1157 = sshll.u32 [#allocation13], 4
      %s1158 = int_to_ptr.vmem [resolvable:$true] %s1157
      %1160 = dma.vmem_to_hbm [thread:$0]  %s1158, 64, %s11, [#allocation4]
    $region73: #{tpu_custom_call.1} parent=1 // pred_fallthru
      _
    // Predicated region
    $region74: #{tpu_custom_call.1} parent=1 // pred_check
      _
    $region75: #{tpu_custom_call.1} parent=1 // pred_check_branch
      %1162 = sbr.rel (0) target = $region77
    $region76: #{tpu_custom_call.1} parent=1 // pred_region
      %1163 = dma.done [#allocation4], 64
    $region77: #{tpu_custom_call.1} parent=1 // pred_fallthru
      _
    %1164 = vsyncpa [#allocation3], 1
    %1165 = vsyncpa [#allocation6], 1
    %1166 = vsyncpa [#allocation9], 1
    %1167 = vsyncpa [#allocation12], 1
    %1168 = vsyncpa [#allocation4], 1

</llo_original>
